<compile_context>
chip_gen: v7x
topology: tpu7x:2x2x1
jax: 0.10.0
libtpu: 0.0.40
codegen_flags: <defaults>
</compile_context>

<pallas_src>
import jax
import jax.numpy as jnp
from jax.experimental import pallas as pl
from jax.experimental.pallas import tpu as pltpu

# Plain Python floats (NOT jnp scalars) so they are inlined as literals and the
# kernel does not capture traced constants.
DT = 1.0 / 90.0        # DiffCloth default timestep
GRAVITY = -9.8         # applied on the y (row index 1) axis

LANE = 128
# (S_TILE, 128) f32 tile = 1 MiB; 5 arrays x 2 pipeline buffers = 10 MiB, which
# fits every generation's default scoped VMEM (v5e 16 MiB, v6e/v7x 32 MiB) and
# v7x's 64 MiB physical VMEM with headroom.
MAX_S_TILE = 2048


def _s_tile(s):
    # Either the full sublane extent (allowed for any size) or a multiple of 8.
    return s if s <= MAX_S_TILE else MAX_S_TILE


def _sim_step_kernel(x_ref, v_ref, a_ref, x_out_ref, v_out_ref):
    # TODO(synk): the real SimFunction runs the C++ DiffCloth projective-
    # dynamics solve (constraint projection, collision handling); this is the
    # explicit symplectic-Euler hot path only.
    # Gravity only acts on the y-coordinate row (grid axis 0 == 1): scalar
    # predicate, no vector iota/where mask.
    g = (pl.program_id(0) == 1).astype(x_ref.dtype) * (DT * GRAVITY)
    v_new = v_ref[...] + DT * a_ref[...] + g
    x_out_ref[...] = (x_ref[...] + DT * v_new).astype(x_out_ref.dtype)
    v_out_ref[...] = v_new.astype(v_out_ref.dtype)


def py_sim_forward(x, v, a, *, donate_state=False):
    """Pallas equivalent of pySim.forward(x, v, a) -> (x_next, v_next)."""
    assert x.shape == v.shape == a.shape
    assert x.ndim == 2 and x.shape[0] == 3
    n = x.shape[1]
    assert n % LANE == 0, "vertex count must be a multiple of 128 (lane width)"
    s = n // LANE
    st = _s_tile(s)

    x3 = x.reshape(3, s, LANE)
    v3 = v.reshape(3, s, LANE)
    a3 = a.reshape(3, s, LANE)

    # Row axis (3) as grid axis 0, vertex tiles as grid axis 1; the row dim is
    # squeezed so each kernel tile is a full-sublane (st, 128) slab.
    spec = pl.BlockSpec((None, st, LANE), lambda r, si: (r, si, 0))

    kwargs = {}
    if donate_state:
        # Reuse x/v HBM buffers for x_next/v_next (rollout loops).
        kwargs["input_output_aliases"] = {0: 0, 1: 1}

    x_next, v_next = pl.pallas_call(
        _sim_step_kernel,
        out_shape=(
            jax.ShapeDtypeStruct((3, s, LANE), x.dtype),
            jax.ShapeDtypeStruct((3, s, LANE), v.dtype),
        ),
        grid=(3, pl.cdiv(s, st)),
        in_specs=[spec, spec, spec],
        out_specs=(spec, spec),
        compiler_params=pltpu.CompilerParams(
            dimension_semantics=("parallel", "parallel")),
        **kwargs,
    )(x3, v3, a3)
    return x_next.reshape(3, n), v_next.reshape(3, n)


def _rollout_kernel(x0_ref, v0_ref, a_ref, x_out_ref, v_out_ref):
    # Output blocks have a constant block index along the (innermost,
    # "arbitrary") time axis, so they stay resident in VMEM and act as the
    # simulation state across all T steps; HBM writeback happens once per
    # (row, vertex-tile).
    @pl.when(pl.program_id(2) == 0)
    def _():
        x_out_ref[...] = x0_ref[...]
        v_out_ref[...] = v0_ref[...]

    g = (pl.program_id(0) == 1).astype(v0_ref.dtype) * (DT * GRAVITY)
    v_new = v_out_ref[...] + DT * a_ref[...] + g
    x_out_ref[...] = (x_out_ref[...] + DT * v_new).astype(x_out_ref.dtype)
    v_out_ref[...] = v_new.astype(v_out_ref.dtype)


def py_sim_rollout(x, v, a_seq):
    """Fused T-step rollout: (x, v) stay VMEM-resident, actions are streamed.

    a_seq: f32[T, 3, N] per-step control accelerations.
    Returns the final (x_T, v_T).
    """
    assert x.shape == v.shape and x.ndim == 2 and x.shape[0] == 3
    assert a_seq.ndim == 3 and a_seq.shape[1:] == x.shape
    t_steps = a_seq.shape[0]
    n = x.shape[1]
    assert n % LANE == 0
    s = n // LANE
    st = _s_tile(s)

    x3 = x.reshape(3, s, LANE)
    v3 = v.reshape(3, s, LANE)
    a4 = a_seq.reshape(t_steps, 3, s, LANE)

    state_spec = pl.BlockSpec((None, st, LANE), lambda r, si, t: (r, si, 0))
    act_spec = pl.BlockSpec((None, None, st, LANE),
                            lambda r, si, t: (t, r, si, 0))

    x_t, v_t = pl.pallas_call(
        _rollout_kernel,
        out_shape=(
            jax.ShapeDtypeStruct((3, s, LANE), x.dtype),
            jax.ShapeDtypeStruct((3, s, LANE), v.dtype),
        ),
        grid=(3, pl.cdiv(s, st), t_steps),
        in_specs=[state_spec, state_spec, act_spec],
        out_specs=(state_spec, state_spec),
        compiler_params=pltpu.CompilerParams(
            dimension_semantics=("parallel", "parallel", "arbitrary")),
    )(x3, v3, a4)
    return x_t.reshape(3, n), v_t.reshape(3, n)


if __name__ == "__main__":
    N = 256  # number of cloth vertices (multiple of 128)
    key = jax.random.PRNGKey(0)
    kx, kv, ka = jax.random.split(key, 3)

    x = jax.random.normal(kx, (3, N), dtype=jnp.float32)
    v = jax.random.normal(kv, (3, N), dtype=jnp.float32) * 0.1
    a = jax.random.normal(ka, (3, N), dtype=jnp.float32) * 0.01

    # --- single step (pySim.forward semantics) ---
    x_next, v_next = py_sim_forward(x, v, a)
    jax.block_until_ready((x_next, v_next))

    g = jnp.zeros((3, 1), jnp.float32).at[1, 0].set(GRAVITY)
    v_ref = v + DT * (a + g)
    x_ref = x + DT * v_ref
    assert jnp.allclose(v_next, v_ref, atol=1e-5)
    assert jnp.allclose(x_next, x_ref, atol=1e-5)

    # --- fused multi-step rollout ---
    T = 8
    a_seq = jax.random.normal(ka, (T, 3, N), dtype=jnp.float32) * 0.01
    x_t, v_t = py_sim_rollout(x, v, a_seq)
    jax.block_until_ready((x_t, v_t))

    x_r, v_r = x, v
    for t in range(T):
        v_r = v_r + DT * (a_seq[t] + g)
        x_r = x_r + DT * v_r
    assert jnp.allclose(v_t, v_r, atol=1e-5)
    assert jnp.allclose(x_t, x_r, atol=1e-5)

    print("KERNEL_OK")
</pallas_src>

<mosaic_0001>
module attributes {stable_mosaic.version = 11 : i64} {
  func.func @_sim_step_kernel(%arg0: i32, %arg1: i32, %arg2: memref<1x2x128xf32, #tpu.memory_space<vmem>>, %arg3: memref<1x2x128xf32, #tpu.memory_space<vmem>>, %arg4: memref<1x2x128xf32, #tpu.memory_space<vmem>>, %arg5: memref<1x2x128xf32, #tpu.memory_space<vmem>>, %arg6: memref<1x2x128xf32, #tpu.memory_space<vmem>>) attributes {dimension_semantics = [#tpu.dimension_semantics<parallel>, #tpu.dimension_semantics<parallel>], iteration_bounds = array<i64: 3, 1>, scalar_prefetch = 0 : i64, scratch_operands = 0 : i64, tpu.core_type = #tpu.core_type<tc>, window_params = [{transform_indices = @transform_0, window_bounds = array<i64: 1, 2, 128>}, {transform_indices = @transform_1, window_bounds = array<i64: 1, 2, 128>}, {transform_indices = @transform_2, window_bounds = array<i64: 1, 2, 128>}, {transform_indices = @transform_3, window_bounds = array<i64: 1, 2, 128>}, {transform_indices = @transform_4, window_bounds = array<i64: 1, 2, 128>}]} {
    %c1_i32 = arith.constant 1 : i32
    %0 = arith.cmpi eq, %arg0, %c1_i32 : i32
    %1 = arith.extui %0 : i1 to i32
    %2 = arith.sitofp %1 : i32 to f32
    %cst = arith.constant -0.108888887 : f32
    %3 = arith.mulf %2, %cst : f32
    %c0 = arith.constant 0 : index
    %c0_0 = arith.constant 0 : index
    %c0_1 = arith.constant 0 : index
    %4 = vector.load %arg3[%c0, %c0_0, %c0_1] : memref<1x2x128xf32, #tpu.memory_space<vmem>>, vector<1x2x128xf32>
    %5 = vector.shape_cast %4 : vector<1x2x128xf32> to vector<2x128xf32>
    %c0_2 = arith.constant 0 : index
    %c0_3 = arith.constant 0 : index
    %c0_4 = arith.constant 0 : index
    %6 = vector.load %arg4[%c0_2, %c0_3, %c0_4] : memref<1x2x128xf32, #tpu.memory_space<vmem>>, vector<1x2x128xf32>
    %7 = vector.shape_cast %6 : vector<1x2x128xf32> to vector<2x128xf32>
    %cst_5 = arith.constant 0.0111111114 : f32
    %8 = vector.broadcast %cst_5 : f32 to vector<2x128xf32>
    %9 = arith.mulf %8, %7 : vector<2x128xf32>
    %10 = arith.addf %5, %9 : vector<2x128xf32>
    %11 = vector.broadcast %3 : f32 to vector<2x128xf32>
    %12 = arith.addf %10, %11 : vector<2x128xf32>
    %c0_6 = arith.constant 0 : index
    %c0_7 = arith.constant 0 : index
    %c0_8 = arith.constant 0 : index
    %13 = vector.load %arg2[%c0_6, %c0_7, %c0_8] : memref<1x2x128xf32, #tpu.memory_space<vmem>>, vector<1x2x128xf32>
    %14 = vector.shape_cast %13 : vector<1x2x128xf32> to vector<2x128xf32>
    %cst_9 = arith.constant 0.0111111114 : f32
    %15 = vector.broadcast %cst_9 : f32 to vector<2x128xf32>
    %16 = arith.mulf %15, %12 : vector<2x128xf32>
    %17 = arith.addf %14, %16 : vector<2x128xf32>
    %c0_10 = arith.constant 0 : index
    %c0_11 = arith.constant 0 : index
    %c0_12 = arith.constant 0 : index
    %18 = vector.load %arg5[%c0_10, %c0_11, %c0_12] : memref<1x2x128xf32, #tpu.memory_space<vmem>>, vector<1x2x128xf32>
    %19 = vector.shape_cast %18 : vector<1x2x128xf32> to vector<2x128xf32>
    %20 = vector.shape_cast %17 : vector<2x128xf32> to vector<1x2x128xf32>
    tpu.vector_store %arg5[%c0_10, %c0_11, %c0_12], %20 {strides = array<i32>} : memref<1x2x128xf32, #tpu.memory_space<vmem>>, vector<1x2x128xf32>,
    %c0_13 = arith.constant 0 : index
    %c0_14 = arith.constant 0 : index
    %c0_15 = arith.constant 0 : index
    %21 = vector.load %arg6[%c0_13, %c0_14, %c0_15] : memref<1x2x128xf32, #tpu.memory_space<vmem>>, vector<1x2x128xf32>
    %22 = vector.shape_cast %21 : vector<1x2x128xf32> to vector<2x128xf32>
    %23 = vector.shape_cast %12 : vector<2x128xf32> to vector<1x2x128xf32>
    tpu.vector_store %arg6[%c0_13, %c0_14, %c0_15], %23 {strides = array<i32>} : memref<1x2x128xf32, #tpu.memory_space<vmem>>, vector<1x2x128xf32>,
    return
  }
  func.func @transform_0(%arg0: i32, %arg1: i32) -> (i32, i32, i32) {
    %c0_i32 = arith.constant 0 : i32
    %c0_i32_0 = arith.constant 0 : i32
    return %arg0, %arg1, %c0_i32 : i32, i32, i32
  }
  func.func @transform_1(%arg0: i32, %arg1: i32) -> (i32, i32, i32) {
    %c0_i32 = arith.constant 0 : i32
    %c0_i32_0 = arith.constant 0 : i32
    return %arg0, %arg1, %c0_i32 : i32, i32, i32
  }
  func.func @transform_2(%arg0: i32, %arg1: i32) -> (i32, i32, i32) {
    %c0_i32 = arith.constant 0 : i32
    %c0_i32_0 = arith.constant 0 : i32
    return %arg0, %arg1, %c0_i32 : i32, i32, i32
  }
  func.func @transform_3(%arg0: i32, %arg1: i32) -> (i32, i32, i32) {
    %c0_i32 = arith.constant 0 : i32
    %c0_i32_0 = arith.constant 0 : i32
    return %arg0, %arg1, %c0_i32 : i32, i32, i32
  }
  func.func @transform_4(%arg0: i32, %arg1: i32) -> (i32, i32, i32) {
    %c0_i32 = arith.constant 0 : i32
    %c0_i32_0 = arith.constant 0 : i32
    return %arg0, %arg1, %c0_i32 : i32, i32, i32
  }
}

</mosaic_0001>

<llo_original>
// kernel: tpu_custom_call.1
$region0: #{tpu_custom_call.1}
  #allocation0 [shape = 'u32[]', space=smem, size = 0x4, offset = 0x4, fixed_abs, tag = 'smem constant byte address 0x4 - core index']
  #allocation1 [shape = 'u32[144,128]{1,0:T(1,128)}', space=vmem, size = 0x12000, scoped, tag = 'internal scratch']
  %s0 = inlined_call_operand.hbm [shape: f32[3,2,128], index: 0, kind: input, shape index: {}]
  %s1 = inlined_call_operand.hbm [shape: f32[3,2,128], index: 1, kind: input, shape index: {}]
  %s2 = inlined_call_operand.vmem [shape: f32[3,2,128], index: 2, kind: input, shape index: {}]
  %s3 = inlined_call_operand.hbm [shape: f32[3,2,128], index: 3, kind: output, shape index: {0}]
  %s4 = inlined_call_operand.hbm [shape: f32[3,2,128], index: 4, kind: output, shape index: {1}]
  %5 = xla_tuple %s3, %s4
  %s6 = sld [smem:[#allocation0]]
  $region61: #{tpu_custom_call.1} parent=0
    _
  %s8 = ssub.s32 1, %s6
  %s9 = scalar_select 0, %s8, %s6
  $region1: #{tpu_custom_call.1} parent=0
    #allocation2 [shape = 'u8[2048]{0}', space=vmem, size = 0x800, scoped, tag = 'input window, operand 0']
    #allocation3 [shape = 's32[2]{0}', space=sflag, size = 0x8, scoped, tag = 'scoped memory for tpu_custom_call.1']
    #allocation4 [shape = 's32[2]{0}', space=sflag, size = 0x8, scoped, tag = 'scoped memory for tpu_custom_call.1']
    #allocation5 [shape = 'u8[2048]{0}', space=vmem, size = 0x800, scoped, tag = 'input window, operand 1']
    #allocation6 [shape = 's32[2]{0}', space=sflag, size = 0x8, scoped, tag = 'scoped memory for tpu_custom_call.1']
    #allocation7 [shape = 'u8[2048]{0}', space=vmem, size = 0x800, scoped, tag = 'output window, operand 0']
    #allocation8 [shape = 'u8[2048]{0}', space=vmem, size = 0x800, scoped, tag = 'output window, operand 1']
    #allocation9 [shape = 's32[2]{0}', space=sflag, size = 0x8, scoped, tag = 'scoped memory for tpu_custom_call.1']
    %10 = vsyncpa [#allocation3], 0
    %s11 = scalar_lea.sflag [#allocation3], 1
    %12 = vsyncpa %s11, 0
    %13 = vsyncpa [#allocation6], 0
    %s14 = scalar_lea.sflag [#allocation6], 1
    %15 = vsyncpa %s14, 0
    %16 = vsyncpa [#allocation4], 0
    %s17 = scalar_lea.sflag [#allocation4], 1
    %18 = vsyncpa %s17, 0
    %19 = vsyncpa [#allocation9], 0
    %s20 = scalar_lea.sflag [#allocation9], 1
    %21 = vsyncpa %s20, 0
    loop: start=0, step=1, limit=5
    $region2: #{tpu_custom_call.1} parent=1 // loop_pre_header
      _
    $region3: #{tpu_custom_call.1} parent=1 // loop_header
      %s23 = sphi 0, %s27
      %p24 = scmp.ge.s32.totalorder %s23, 5
      %s30 = sphi 0, %s42
      %s31 = sphi 0, %s38
      %s32 = sphi 0, %s30
      %s33 = sphi 0, %s31
      %s34 = sphi 0, %s32
      %s35 = sphi 0, %s33
      %s47 = sphi 0, %s49
      %s50 = sphi 0, %s47
      %s51 = sphi 0, %s50
      %s67 = sphi 0, %s51
      %s75 = sphi 0, %s77
      %s78 = sphi 0, %s75
      %s79 = sphi 0, %s78
      %s95 = sphi 0, %s79
      %s103 = sphi 0, %s105
      %s106 = sphi 0, %s103
      %s107 = sphi 0, %s106
      %s123 = sphi 0, %s107
      %s131 = sphi 0, %s133
      %s134 = sphi 0, %s131
      %s135 = sphi 0, %s134
      %s151 = sphi 0, %s135
      %s159 = sphi 0, %s161
      %s162 = sphi 0, %s159
      %s163 = sphi 0, %s162
      %s179 = sphi 0, %s163
    $region4: #{tpu_custom_call.1} parent=1 // loop_header_branch
      %26 = sbr.rel (%p24) target = $region8
    $region5: #{tpu_custom_call.1} parent=1 // loop_body
      %s28 = ssub.s32 %s23, 1
      %s29 = ssub.s32 %s23, 2
      %s36 = sadd.s32 1, %s31
      %p37 = scmp.ge.s32.totalorder %s36, 1
      %s38 = scalar_select %p37, 0, %s36
      %s39 = sadd.s32 1, %s30
      %s40 = scalar_select %p37, %s39, %s30
      %p41 = scmp.ge.s32.totalorder %s40, 3
      %s42 = scalar_select %p41, 0, %s40
      %s43 = ssub.s32 %s30, %s42
      %s44 = ssub.s32 %s31, %s38
      %s45 = sor.u32 %s43, %s44
      %p46 = scmp.eq.s32.totalorder %s45, 0
      %s48 = sadd.s32 %s47, 1
      %s49 = scalar_select %p46, %s47, %s48
      %p52 = pneg %p46
      %p53 = scmp.eq.s32.totalorder %s23, 2
      %p54 = por %p52, %p53
      %p55 = scmp.ne.s32.totalorder %s47, %s50
      %p56 = scmp.eq.s32.totalorder %s23, 0
      %p57 = por %p55, %p56
      %p58 = scmp.ne.s32.totalorder %s47, %s50
      %p59 = scmp.eq.s32.totalorder %s28, 2
      %p60 = por %p58, %p59
      %p61 = scmp.ne.s32.totalorder %s50, %s51
      %p62 = scmp.eq.s32.totalorder %s28, 0
      %p63 = por %p61, %p62
      %p64 = scmp.ne.s32.totalorder %s50, %s51
      %p65 = scmp.eq.s32.totalorder %s29, 2
      %p66 = por %p64, %p65
      %p68 = scmp.ne.s32.totalorder %s51, %s67
      %p69 = scmp.eq.s32.totalorder %s29, 0
      %p70 = por %p68, %p69
      %s71 = ssub.s32 %s30, %s42
      %s72 = ssub.s32 %s31, %s38
      %s73 = sor.u32 %s71, %s72
      %p74 = scmp.eq.s32.totalorder %s73, 0
      %s76 = sadd.s32 %s75, 1
      %s77 = scalar_select %p74, %s75, %s76
      %p80 = pneg %p74
      %p81 = scmp.eq.s32.totalorder %s23, 2
      %p82 = por %p80, %p81
      %p83 = scmp.ne.s32.totalorder %s75, %s78
      %p84 = scmp.eq.s32.totalorder %s23, 0
      %p85 = por %p83, %p84
      %p86 = scmp.ne.s32.totalorder %s75, %s78
      %p87 = scmp.eq.s32.totalorder %s28, 2
      %p88 = por %p86, %p87
      %p89 = scmp.ne.s32.totalorder %s78, %s79
      %p90 = scmp.eq.s32.totalorder %s28, 0
      %p91 = por %p89, %p90
      %p92 = scmp.ne.s32.totalorder %s78, %s79
      %p93 = scmp.eq.s32.totalorder %s29, 2
      %p94 = por %p92, %p93
      %p96 = scmp.ne.s32.totalorder %s79, %s95
      %p97 = scmp.eq.s32.totalorder %s29, 0
      %p98 = por %p96, %p97
      %s99 = ssub.s32 %s30, %s42
      %s100 = ssub.s32 %s31, %s38
      %s101 = sor.u32 %s99, %s100
      %p102 = scmp.eq.s32.totalorder %s101, 0
      %s104 = sadd.s32 %s103, 1
      %s105 = scalar_select %p102, %s103, %s104
      %p108 = pneg %p102
      %p109 = scmp.eq.s32.totalorder %s23, 2
      %p110 = por %p108, %p109
      %p111 = scmp.ne.s32.totalorder %s103, %s106
      %p112 = scmp.eq.s32.totalorder %s23, 0
      %p113 = por %p111, %p112
      %p114 = scmp.ne.s32.totalorder %s103, %s106
      %p115 = scmp.eq.s32.totalorder %s28, 2
      %p116 = por %p114, %p115
      %p117 = scmp.ne.s32.totalorder %s106, %s107
      %p118 = scmp.eq.s32.totalorder %s28, 0
      %p119 = por %p117, %p118
      %p120 = scmp.ne.s32.totalorder %s106, %s107
      %p121 = scmp.eq.s32.totalorder %s29, 2
      %p122 = por %p120, %p121
      %p124 = scmp.ne.s32.totalorder %s107, %s123
      %p125 = scmp.eq.s32.totalorder %s29, 0
      %p126 = por %p124, %p125
      %s127 = ssub.s32 %s30, %s42
      %s128 = ssub.s32 %s31, %s38
      %s129 = sor.u32 %s127, %s128
      %p130 = scmp.eq.s32.totalorder %s129, 0
      %s132 = sadd.s32 %s131, 1
      %s133 = scalar_select %p130, %s131, %s132
      %p136 = pneg %p130
      %p137 = scmp.eq.s32.totalorder %s23, 2
      %p138 = por %p136, %p137
      %p139 = scmp.ne.s32.totalorder %s131, %s134
      %p140 = scmp.eq.s32.totalorder %s23, 0
      %p141 = por %p139, %p140
      %p142 = scmp.ne.s32.totalorder %s131, %s134
      %p143 = scmp.eq.s32.totalorder %s28, 2
      %p144 = por %p142, %p143
      %p145 = scmp.ne.s32.totalorder %s134, %s135
      %p146 = scmp.eq.s32.totalorder %s28, 0
      %p147 = por %p145, %p146
      %p148 = scmp.ne.s32.totalorder %s134, %s135
      %p149 = scmp.eq.s32.totalorder %s29, 2
      %p150 = por %p148, %p149
      %p152 = scmp.ne.s32.totalorder %s135, %s151
      %p153 = scmp.eq.s32.totalorder %s29, 0
      %p154 = por %p152, %p153
      %s155 = ssub.s32 %s30, %s42
      %s156 = ssub.s32 %s31, %s38
      %s157 = sor.u32 %s155, %s156
      %p158 = scmp.eq.s32.totalorder %s157, 0
      %s160 = sadd.s32 %s159, 1
      %s161 = scalar_select %p158, %s159, %s160
      %p164 = pneg %p158
      %p165 = scmp.eq.s32.totalorder %s23, 2
      %p166 = por %p164, %p165
      %p167 = scmp.ne.s32.totalorder %s159, %s162
      %p168 = scmp.eq.s32.totalorder %s23, 0
      %p169 = por %p167, %p168
      %p170 = scmp.ne.s32.totalorder %s159, %s162
      %p171 = scmp.eq.s32.totalorder %s28, 2
      %p172 = por %p170, %p171
      %p173 = scmp.ne.s32.totalorder %s162, %s163
      %p174 = scmp.eq.s32.totalorder %s28, 0
      %p175 = por %p173, %p174
      %p176 = scmp.ne.s32.totalorder %s162, %s163
      %p177 = scmp.eq.s32.totalorder %s29, 2
      %p178 = por %p176, %p177
      %p180 = scmp.ne.s32.totalorder %s163, %s179
      %p181 = scmp.eq.s32.totalorder %s29, 0
      %p182 = por %p180, %p181
      %p183 = scmp.le.s32.totalorder 1, %s23
      %p184 = scmp.lt.s32.totalorder %s23, 4
      %p185 = pnand %p183, %p184
      %p186 = pneg %p185
      // Predicated region
      $region9: #{tpu_custom_call.1} parent=5 // pred_check
        _
      $region10: #{tpu_custom_call.1} parent=5 // pred_check_branch
        %188 = sbr.rel (%p185) target = $region12
      $region11: #{tpu_custom_call.1} parent=5 // pred_region
        %s189 = ssub.s32 %s23, 1
      $region12: #{tpu_custom_call.1} parent=5 // pred_fallthru
        _
      %p190 = scmp.lt.s32.totalorder %s23, 3
      // Predicated region
      $region13: #{tpu_custom_call.1} parent=5 // pred_check
        %p191 = pneg %p190
      $region14: #{tpu_custom_call.1} parent=5 // pred_check_branch
        %193 = sbr.rel (%p191) target = $region16
      $region15: #{tpu_custom_call.1} parent=5 // pred_region
        // Predicated region
        $region17: #{tpu_custom_call.1} parent=15 // pred_check
          %p194 = pneg %p57
        $region18: #{tpu_custom_call.1} parent=15 // pred_check_branch
          %196 = sbr.rel (%p194) target = $region20
        $region19: #{tpu_custom_call.1} parent=15 // pred_region
          %s197 = sand.u32 %s47, 1
          %s198 = scalar_lea.sflag [#allocation3], %s197
          %s199 = sand.u32 %s47, 1
          %s200 = smul.addr %s199, 2
          %s201 = scalar_lea.vmem [#allocation2], %s200
          %s203 = ssub.s32 32, 32
          %204 = vsyncadd %s198, %s203
          %s205 = sadd.s32 %s31, %s30
          %s206 = smul.addr %s205, 32
          %s207 = scalar_lea.hbm %s0, %s206
          %s209 = sshll.u32 %s201, 4
          %s210 = int_to_ptr.vmem [resolvable:$true] %s209
          %212 = dma.hbm_to_vmem [thread:$0]  %s207, 32, %s210, %s198
        $region20: #{tpu_custom_call.1} parent=15 // pred_fallthru
          _
        // Predicated region
        $region21: #{tpu_custom_call.1} parent=15 // pred_check
          %p213 = pneg %p85
        $region22: #{tpu_custom_call.1} parent=15 // pred_check_branch
          %215 = sbr.rel (%p213) target = $region24
        $region23: #{tpu_custom_call.1} parent=15 // pred_region
          %s216 = sand.u32 %s75, 1
          %s217 = scalar_lea.sflag [#allocation6], %s216
          %s218 = sand.u32 %s75, 1
          %s219 = smul.addr %s218, 2
          %s220 = scalar_lea.vmem [#allocation5], %s219
          %s222 = ssub.s32 32, 32
          %223 = vsyncadd %s217, %s222
          %s224 = sadd.s32 %s31, %s30
          %s225 = smul.addr %s224, 32
          %s226 = scalar_lea.hbm %s1, %s225
          %s228 = sshll.u32 %s220, 4
          %s229 = int_to_ptr.vmem [resolvable:$true] %s228
          %231 = dma.hbm_to_vmem [thread:$0]  %s226, 32, %s229, %s217
        $region24: #{tpu_custom_call.1} parent=15 // pred_fallthru
          _
        // Predicated region
        $region25: #{tpu_custom_call.1} parent=15 // pred_check
          %p232 = pneg %p113
        $region26: #{tpu_custom_call.1} parent=15 // pred_check_branch
          %234 = sbr.rel (%p232) target = $region28
        $region27: #{tpu_custom_call.1} parent=15 // pred_region
          %p235 = scmp.lt.s32.totalorder %s30, 2
          %s236 = scalar_select %p235, %s30, 2
          %p237 = scmp.lt.s32.totalorder %s31, 0
          %s238 = scalar_select %p237, %s31, 0
          %s239 = sadd.s32 %s238, %s236
          %s240 = smul.addr %s239, 2
          %s241 = scalar_lea.vmem %s2, %s240
        $region28: #{tpu_custom_call.1} parent=15 // pred_fallthru
          _
      $region16: #{tpu_custom_call.1} parent=5 // pred_fallthru
        _
      %p242 = scmp.le.s32.totalorder 1, %s23
      %p243 = scmp.lt.s32.totalorder %s23, 4
      %p244 = pnand %p242, %p243
      %p245 = pneg %p244
      // Predicated region
      $region29: #{tpu_custom_call.1} parent=5 // pred_check
        _
      $region30: #{tpu_custom_call.1} parent=5 // pred_check_branch
        %247 = sbr.rel (%p244) target = $region32
      $region31: #{tpu_custom_call.1} parent=5 // pred_region
        %s248 = ssub.s32 %s23, 1
        %s249 = sand.u32 %s50, 1
        %s250 = scalar_lea.sflag [#allocation3], %s249
        %s251 = sand.u32 %s50, 1
        %s252 = smul.addr %s251, 2
        %s253 = scalar_lea.vmem [#allocation2], %s252
        // Predicated region
        $region33: #{tpu_custom_call.1} parent=31 // pred_check
          %p254 = pneg %p63
        $region34: #{tpu_custom_call.1} parent=31 // pred_check_branch
          %256 = sbr.rel (%p254) target = $region36
        $region35: #{tpu_custom_call.1} parent=31 // pred_region
          %257 = dma.done %s250, 32
        $region36: #{tpu_custom_call.1} parent=31 // pred_fallthru
          _
        %s258 = sand.u32 %s78, 1
        %s259 = scalar_lea.sflag [#allocation6], %s258
        %s260 = sand.u32 %s78, 1
        %s261 = smul.addr %s260, 2
        %s262 = scalar_lea.vmem [#allocation5], %s261
        // Predicated region
        $region37: #{tpu_custom_call.1} parent=31 // pred_check
          %p263 = pneg %p91
        $region38: #{tpu_custom_call.1} parent=31 // pred_check_branch
          %265 = sbr.rel (%p263) target = $region40
        $region39: #{tpu_custom_call.1} parent=31 // pred_region
          %266 = dma.done %s259, 32
        $region40: #{tpu_custom_call.1} parent=31 // pred_fallthru
          _
        %s267 = sand.u32 %s50, 1
        %s268 = scalar_lea.sflag [#allocation3], %s267
        %s269 = sand.u32 %s50, 1
        %s270 = smul.addr %s269, 2
        %s271 = scalar_lea.vmem [#allocation2], %s270
        %p272 = pneg %p63
        %p273 = pneg %p60
        %s274 = sand.u32 %s78, 1
        %s275 = scalar_lea.sflag [#allocation6], %s274
        %s276 = sand.u32 %s78, 1
        %s277 = smul.addr %s276, 2
        %s278 = scalar_lea.vmem [#allocation5], %s277
        %p279 = pneg %p91
        %p280 = pneg %p88
        %p281 = scmp.lt.s32.totalorder %s32, 2
        %s282 = scalar_select %p281, %s32, 2
        %p283 = scmp.lt.s32.totalorder %s33, 0
        %s284 = scalar_select %p283, %s33, 0
        %s285 = sadd.s32 %s284, %s282
        %s286 = smul.addr %s285, 2
        %s287 = scalar_lea.vmem %s2, %s286
        %p288 = pneg %p119
        %p289 = pneg %p116
        %p290 = pneg %p147
        %p291 = pneg %p144
        %s292 = sand.u32 %s134, 1
        %s293 = scalar_lea.sflag [#allocation4], %s292
        %s294 = sand.u32 %s134, 1
        %s295 = smul.addr %s294, 2
        %s296 = scalar_lea.vmem [#allocation7], %s295
        %p297 = pneg %p175
        %p298 = pneg %p172
        %s299 = sand.u32 %s162, 1
        %s300 = scalar_lea.sflag [#allocation9], %s299
        %s301 = sand.u32 %s162, 1
        %s302 = smul.addr %s301, 2
        %s303 = scalar_lea.vmem [#allocation8], %s302
        %p304 = scmp.lt.s32.totalorder %s32, 2
        %s305 = scalar_select %p304, %s32, 2
        %p306 = scmp.lt.s32.totalorder %s33, 0
        %s307 = scalar_select %p306, %s33, 0
        %s308 = sadd.s32 %s307, %s305
        %s309 = smul.addr %s308, 2
        %s310 = scalar_lea.vmem %s2, %s309
        %p311 = scmp.eq.s32.totalorder %s32, 1
        %s312 = scalar_select %p311, 1, 0
        %s313 = scvt.s32.f32 %s312
        %s314 = smul.f32 %s313, -0.10888889
        %v315 = vld [vmem:[%s262] sm:$0x3]
        %v316 = vld [vmem:[%s310] sm:$0x3]
        %v317 = vmul.f32 %v316, 0.011111111
        %v318 = vadd.f32 %v315, %v317
        %v319 = vstv %s314
        %v320 = vadd.f32 %v318, %v319
        %v321 = vld [vmem:[%s253] sm:$0x3]
        %v322 = vmul.f32 %v320, 0.011111111
        %v323 = vadd.f32 %v321, %v322
        %324 = vst [vmem:[%s296] sm:$0x3] %v323
        %325 = vst [vmem:[%s303] sm:$0x3] %v320
        %s326 = sand.u32 %s134, 1
        %s327 = scalar_lea.sflag [#allocation4], %s326
        %s328 = sand.u32 %s134, 1
        %s329 = smul.addr %s328, 2
        %s330 = scalar_lea.vmem [#allocation7], %s329
        %s331 = sand.u32 %s162, 1
        %s332 = scalar_lea.sflag [#allocation9], %s331
        %s333 = sand.u32 %s162, 1
        %s334 = smul.addr %s333, 2
        %s335 = scalar_lea.vmem [#allocation8], %s334
        // Predicated region
        $region41: #{tpu_custom_call.1} parent=31 // pred_check
          %p336 = pneg %p144
        $region42: #{tpu_custom_call.1} parent=31 // pred_check_branch
          %338 = sbr.rel (%p336) target = $region44
        $region43: #{tpu_custom_call.1} parent=31 // pred_region
          %s340 = ssub.s32 32, 32
          %341 = vsyncadd %s327, %s340
          %s342 = sadd.s32 %s33, %s32
          %s343 = smul.addr %s342, 32
          %s344 = scalar_lea.hbm %s3, %s343
          %s346 = sshll.u32 %s330, 4
          %s347 = int_to_ptr.vmem [resolvable:$true] %s346
          %349 = dma.vmem_to_hbm [thread:$0]  %s347, 32, %s344, %s327
        $region44: #{tpu_custom_call.1} parent=31 // pred_fallthru
          _
        // Predicated region
        $region45: #{tpu_custom_call.1} parent=31 // pred_check
          %p350 = pneg %p172
        $region46: #{tpu_custom_call.1} parent=31 // pred_check_branch
          %352 = sbr.rel (%p350) target = $region48
        $region47: #{tpu_custom_call.1} parent=31 // pred_region
          %s354 = ssub.s32 32, 32
          %355 = vsyncadd %s332, %s354
          %s356 = sadd.s32 %s33, %s32
          %s357 = smul.addr %s356, 32
          %s358 = scalar_lea.hbm %s4, %s357
          %s360 = sshll.u32 %s335, 4
          %s361 = int_to_ptr.vmem [resolvable:$true] %s360
          %363 = dma.vmem_to_hbm [thread:$0]  %s361, 32, %s358, %s332
        $region48: #{tpu_custom_call.1} parent=31 // pred_fallthru
          _
      $region32: #{tpu_custom_call.1} parent=5 // pred_fallthru
        _
      %p364 = scmp.le.s32.totalorder 2, %s23
      // Predicated region
      $region49: #{tpu_custom_call.1} parent=5 // pred_check
        %p365 = pneg %p364
      $region50: #{tpu_custom_call.1} parent=5 // pred_check_branch
        %367 = sbr.rel (%p365) target = $region52
      $region51: #{tpu_custom_call.1} parent=5 // pred_region
        %s368 = ssub.s32 %s23, 2
        // Predicated region
        $region53: #{tpu_custom_call.1} parent=51 // pred_check
          %p369 = pneg %p150
        $region54: #{tpu_custom_call.1} parent=51 // pred_check_branch
          %371 = sbr.rel (%p369) target = $region56
        $region55: #{tpu_custom_call.1} parent=51 // pred_region
          %s372 = sand.u32 %s135, 1
          %s373 = scalar_lea.sflag [#allocation4], %s372
          %s374 = sand.u32 %s135, 1
          %s375 = smul.addr %s374, 2
          %s376 = scalar_lea.vmem [#allocation7], %s375
          %377 = dma.done %s373, 32
        $region56: #{tpu_custom_call.1} parent=51 // pred_fallthru
          _
        // Predicated region
        $region57: #{tpu_custom_call.1} parent=51 // pred_check
          %p378 = pneg %p178
        $region58: #{tpu_custom_call.1} parent=51 // pred_check_branch
          %380 = sbr.rel (%p378) target = $region60
        $region59: #{tpu_custom_call.1} parent=51 // pred_region
          %s381 = sand.u32 %s163, 1
          %s382 = scalar_lea.sflag [#allocation9], %s381
          %s383 = sand.u32 %s163, 1
          %s384 = smul.addr %s383, 2
          %s385 = scalar_lea.vmem [#allocation8], %s384
          %386 = dma.done %s382, 32
        $region60: #{tpu_custom_call.1} parent=51 // pred_fallthru
          _
      $region52: #{tpu_custom_call.1} parent=5 // pred_fallthru
        _
    $region6: #{tpu_custom_call.1} parent=1 // loop_footer
      %s27 = sadd.s32 1, %s23
    $region7: #{tpu_custom_call.1} parent=1 // loop_footer_branch
      %22 = sbr.rel target = $region3
    $region8: #{tpu_custom_call.1} parent=1 // loop_exit
      _
    %387 = vsyncpa [#allocation3], 1
    %s388 = scalar_lea.sflag [#allocation3], 1
    %389 = vsyncpa %s388, 1
    %390 = vsyncpa [#allocation6], 1
    %s391 = scalar_lea.sflag [#allocation6], 1
    %392 = vsyncpa %s391, 1
    %393 = vsyncpa [#allocation4], 1
    %s394 = scalar_lea.sflag [#allocation4], 1
    %395 = vsyncpa %s394, 1
    %396 = vsyncpa [#allocation9], 1
    %s397 = scalar_lea.sflag [#allocation9], 1
    %398 = vsyncpa %s397, 1

</llo_original>
